<compile_context>
chip_gen: v7x
topology: tpu7x:2x2x1
jax: 0.10.0
libtpu: 0.0.40
codegen_flags: <defaults>
</compile_context>

<pallas_src>
import functools

import jax
import jax.numpy as jnp
from jax.experimental import pallas as pl
from jax.experimental.pallas import tpu as pltpu

INPUT_SIZE = 32    # PLDA embedding dim for the synthetic example
HIDDEN1 = 50
HIDDEN2 = 20
OUTPUT_SIZE = 1    # forward ends with .squeeze(1), so output_size = 1
BATCH_TILE = 2048  # rows per grid step; multiple of 256 (v6e MXU) / 128 lanes


def _mlp_kernel(x_ref, w1_ref, b1_ref, w2_ref, b2_ref, w3t_ref, b3_ref, o_ref):
    # fc1 + ReLU. Cast x / w1 to bf16 in-kernel (VPU, free under the mem-bound
    # roofline) so the MXU runs its native bf16 path; accumulate in f32.
    x_bf = x_ref[...].astype(jnp.bfloat16)
    w1_bf = w1_ref[...].astype(jnp.bfloat16)
    h1 = jnp.dot(x_bf, w1_bf, preferred_element_type=jnp.float32)
    h1 = jnp.maximum(h1 + b1_ref[...], 0.0)

    # fc2 + ReLU (f32 accumulation).
    h2 = jnp.dot(h1, w2_ref[...], preferred_element_type=jnp.float32)
    h2 = jnp.maximum(h2 + b2_ref[...], 0.0)

    # fc3 (20 -> 1), emitted lane-dense: contract w3's single row against h2's
    # feature axis -> (1, TILE) with batch on the lane axis (NT matmul, same
    # pattern as q @ k.T), so no relayout of an N=1 MXU result is needed.
    logits_t = jax.lax.dot_general(
        w3t_ref[...], h2,
        dimension_numbers=(((1,), (1,)), ((), ())),
        preferred_element_type=jnp.float32) + b3_ref[...]

    # Sigmoid: exp goes to the otherwise-idle EUP slot.
    o_ref[...] = jax.nn.sigmoid(logits_t).astype(o_ref.dtype)


@functools.partial(jax.jit, static_argnames=("batch_tile",))
def single_layer_classifier(x, w1, b1, w2, b2, w3, b3, batch_tile=BATCH_TILE):
    """x: [B, input_size]. Weights stored (in, out); biases (1, out) or (out,).

    Returns [B] float32 sigmoid probabilities (== torch forward's squeeze(1)).
    """
    B, D = x.shape
    H1 = w1.shape[1]
    H2 = w2.shape[1]
    assert w3.shape[-1] == 1, "output_size must be 1 (forward squeezes dim 1)"

    # If the batch is smaller than the tile, shrink the block to the full array
    # (always a legal block shape); otherwise use the full tile and let Pallas
    # handle the trailing partial block. No jnp.pad of x either way.
    bt = min(batch_tile, B)
    num_tiles = pl.cdiv(B, bt)

    x_f = x.astype(jnp.float32)
    w1_f = w1.astype(jnp.float32)
    b1_2d = b1.reshape(1, H1).astype(jnp.float32)
    w2_f = w2.astype(jnp.float32)
    b2_2d = b2.reshape(1, H2).astype(jnp.float32)
    w3t = w3.reshape(1, H2).astype(jnp.float32)   # (1, H2) row == w3.T
    b3_2d = b3.reshape(1, 1).astype(jnp.float32)

    out = pl.pallas_call(
        _mlp_kernel,
        out_shape=jax.ShapeDtypeStruct((num_tiles, bt), jnp.float32),
        grid_spec=pltpu.PrefetchScalarGridSpec(
            num_scalar_prefetch=0,
            grid=(num_tiles,),
            in_specs=[
                # x: tiled over batch, full feature dim on the lanes.
                pl.BlockSpec((bt, D), lambda i: (i, 0)),
                # parameters: full (tiny) arrays, same block every grid step.
                pl.BlockSpec((D, H1), lambda i: (0, 0)),
                pl.BlockSpec((1, H1), lambda i: (0, 0)),
                pl.BlockSpec((H1, H2), lambda i: (0, 0)),
                pl.BlockSpec((1, H2), lambda i: (0, 0)),
                pl.BlockSpec((1, H2), lambda i: (0, 0)),
                pl.BlockSpec((1, 1), lambda i: (0, 0)),
            ],
            # Lane-dense output: one full-width (1, bt) row per grid step.
            out_specs=pl.BlockSpec((1, bt), lambda i: (i, 0)),
        ),
        compiler_params=pltpu.CompilerParams(
            dimension_semantics=("parallel",)),
    )(x_f, w1_f, b1_2d, w2_f, b2_2d, w3t, b3_2d)

    # (num_tiles, bt) -> flat; drop trailing-partial-block garbage rows.
    # This flattening is also the torch .squeeze(1).
    return out.reshape(-1)[:B]


def init_params(key, input_size=INPUT_SIZE, output_size=OUTPUT_SIZE):
    """Deterministic synthetic params; weights stored as (in, out)."""
    k1, k2, k3, k4, k5, k6 = jax.random.split(key, 6)

    def uni(k, shape, fan_in):
        bound = 1.0 / jnp.sqrt(fan_in)
        return jax.random.uniform(k, shape, jnp.float32, -bound, bound)

    w1 = uni(k1, (input_size, HIDDEN1), input_size)
    b1 = uni(k2, (1, HIDDEN1), input_size)
    w2 = uni(k3, (HIDDEN1, HIDDEN2), HIDDEN1)
    b2 = uni(k4, (1, HIDDEN2), HIDDEN1)
    w3 = uni(k5, (HIDDEN2, output_size), HIDDEN2)
    b3 = uni(k6, (1, output_size), HIDDEN2)
    return w1, b1, w2, b2, w3, b3


def _reference(x, w1, b1, w2, b2, w3, b3):
    # Mirrors the kernel's numerics: x / w1 rounded to bf16, f32 math after.
    hp = jax.lax.Precision.HIGHEST
    xb = x.astype(jnp.bfloat16).astype(jnp.float32)
    w1b = w1.astype(jnp.bfloat16).astype(jnp.float32)
    h1 = jnp.maximum(jnp.dot(xb, w1b, precision=hp) + b1, 0.0)
    h2 = jnp.maximum(jnp.dot(h1, w2, precision=hp) + b2, 0.0)
    logits = jnp.dot(h2, w3, precision=hp) + b3
    return jax.nn.sigmoid(logits)[:, 0]


if __name__ == "__main__":
    key = jax.random.PRNGKey(0)
    kx, kx2, kp = jax.random.split(key, 3)
    params = init_params(kp)

    # Small demo batch (single block, smaller than the tile).
    x_small = jax.random.normal(kx, (2, INPUT_SIZE), jnp.float32)
    out_small = jax.block_until_ready(single_layer_classifier(x_small, *params))
    ref_small = _reference(x_small, *params)
    assert out_small.shape == (2,), out_small.shape
    assert jnp.allclose(out_small, ref_small, atol=1e-4, rtol=1e-4), (
        out_small, ref_small)

    # Larger batch: exercises multiple grid steps + trailing partial block.
    x_big = jax.random.normal(kx2, (4696, INPUT_SIZE), jnp.float32)
    out_big = jax.block_until_ready(single_layer_classifier(x_big, *params))
    ref_big = _reference(x_big, *params)
    assert out_big.shape == (4696,), out_big.shape
    assert jnp.allclose(out_big, ref_big, atol=1e-4, rtol=1e-4), float(
        jnp.max(jnp.abs(out_big - ref_big)))

    print("KERNEL_OK")
</pallas_src>

<mosaic_0001>
module attributes {stable_mosaic.version = 11 : i64} {
  func.func @_mlp_kernel(%arg0: i32, %arg1: memref<2x32xf32, #tpu.memory_space<vmem>>, %arg2: memref<32x50xf32, #tpu.memory_space<vmem>>, %arg3: memref<1x50xf32, #tpu.memory_space<vmem>>, %arg4: memref<50x20xf32, #tpu.memory_space<vmem>>, %arg5: memref<1x20xf32, #tpu.memory_space<vmem>>, %arg6: memref<1x20xf32, #tpu.memory_space<vmem>>, %arg7: memref<1x1xf32, #tpu.memory_space<vmem>>, %arg8: memref<1x2xf32, #tpu.memory_space<vmem>>) attributes {dimension_semantics = [#tpu.dimension_semantics<parallel>], iteration_bounds = array<i64: 1>, scalar_prefetch = 0 : i64, scratch_operands = 0 : i64, tpu.core_type = #tpu.core_type<tc>, window_params = [{transform_indices = @transform_0, window_bounds = array<i64: 2, 32>}, {pipeline_mode = #tpu.pipeline_mode<synchronous>, transform_indices = @transform_1, window_bounds = array<i64: 32, 50>}, {pipeline_mode = #tpu.pipeline_mode<synchronous>, transform_indices = @transform_2, window_bounds = array<i64: 1, 50>}, {pipeline_mode = #tpu.pipeline_mode<synchronous>, transform_indices = @transform_3, window_bounds = array<i64: 50, 20>}, {pipeline_mode = #tpu.pipeline_mode<synchronous>, transform_indices = @transform_4, window_bounds = array<i64: 1, 20>}, {pipeline_mode = #tpu.pipeline_mode<synchronous>, transform_indices = @transform_5, window_bounds = array<i64: 1, 20>}, {pipeline_mode = #tpu.pipeline_mode<synchronous>, transform_indices = @transform_6, window_bounds = array<i64: 1, 1>}, {transform_indices = @transform_7, window_bounds = array<i64: 1, 2>}]} {
    %c0 = arith.constant 0 : index
    %c0_0 = arith.constant 0 : index
    %0 = vector.load %arg1[%c0, %c0_0] : memref<2x32xf32, #tpu.memory_space<vmem>>, vector<2x32xf32>
    %1 = arith.truncf %0 : vector<2x32xf32> to vector<2x32xbf16>
    %c0_1 = arith.constant 0 : index
    %c0_2 = arith.constant 0 : index
    %2 = vector.load %arg2[%c0_1, %c0_2] : memref<32x50xf32, #tpu.memory_space<vmem>>, vector<32x50xf32>
    %3 = arith.truncf %2 : vector<32x50xf32> to vector<32x50xbf16>
    %cst = arith.constant dense<0.000000e+00> : vector<2x50xf32>
    %4 = tpu.matmul %1, %3, %cst {dimension_numbers = #tpu.dot_dimension_numbers<[1], [0], [0], [1], [0, 0, 1, 1], [], []>} : vector<2x32xbf16>, vector<32x50xbf16>, vector<2x50xf32> -> vector<2x50xf32>
    %c0_3 = arith.constant 0 : index
    %c0_4 = arith.constant 0 : index
    %5 = vector.load %arg3[%c0_3, %c0_4] : memref<1x50xf32, #tpu.memory_space<vmem>>, vector<1x50xf32>
    %6 = vector.broadcast %5 : vector<1x50xf32> to vector<2x50xf32>
    %7 = arith.addf %4, %6 : vector<2x50xf32>
    %cst_5 = arith.constant 0.000000e+00 : f32
    %8 = vector.broadcast %cst_5 : f32 to vector<2x50xf32>
    %9 = arith.maximumf %7, %8 : vector<2x50xf32>
    %c0_6 = arith.constant 0 : index
    %c0_7 = arith.constant 0 : index
    %10 = vector.load %arg4[%c0_6, %c0_7] : memref<50x20xf32, #tpu.memory_space<vmem>>, vector<50x20xf32>
    %cst_8 = arith.constant dense<0.000000e+00> : vector<2x20xf32>
    %11 = tpu.matmul %9, %10, %cst_8 {dimension_numbers = #tpu.dot_dimension_numbers<[1], [0], [0], [1], [0, 0, 1, 1], [], []>} : vector<2x50xf32>, vector<50x20xf32>, vector<2x20xf32> -> vector<2x20xf32>
    %c0_9 = arith.constant 0 : index
    %c0_10 = arith.constant 0 : index
    %12 = vector.load %arg5[%c0_9, %c0_10] : memref<1x20xf32, #tpu.memory_space<vmem>>, vector<1x20xf32>
    %13 = vector.broadcast %12 : vector<1x20xf32> to vector<2x20xf32>
    %14 = arith.addf %11, %13 : vector<2x20xf32>
    %cst_11 = arith.constant 0.000000e+00 : f32
    %15 = vector.broadcast %cst_11 : f32 to vector<2x20xf32>
    %16 = arith.maximumf %14, %15 : vector<2x20xf32>
    %c0_12 = arith.constant 0 : index
    %c0_13 = arith.constant 0 : index
    %17 = vector.load %arg6[%c0_12, %c0_13] : memref<1x20xf32, #tpu.memory_space<vmem>>, vector<1x20xf32>
    %cst_14 = arith.constant dense<0.000000e+00> : vector<1x2xf32>
    %18 = tpu.matmul %17, %16, %cst_14 {dimension_numbers = #tpu.dot_dimension_numbers<[1], [1], [0], [0], [0, 0, 1, 0], [], []>} : vector<1x20xf32>, vector<2x20xf32>, vector<1x2xf32> -> vector<1x2xf32>
    %c0_15 = arith.constant 0 : index
    %c0_16 = arith.constant 0 : index
    %19 = vector.load %arg7[%c0_15, %c0_16] : memref<1x1xf32, #tpu.memory_space<vmem>>, vector<1x1xf32>
    %20 = vector.broadcast %19 : vector<1x1xf32> to vector<1x2xf32>
    %21 = arith.addf %18, %20 : vector<1x2xf32>
    %22 = arith.negf %21 : vector<1x2xf32>
    %23 = math.exp %22 : vector<1x2xf32>
    %cst_17 = arith.constant 1.000000e+00 : f32
    %24 = vector.broadcast %cst_17 : f32 to vector<1x2xf32>
    %25 = arith.addf %24, %23 : vector<1x2xf32>
    %26 = arith.divf %24, %25 : vector<1x2xf32>
    %c0_18 = arith.constant 0 : index
    %c0_19 = arith.constant 0 : index
    %27 = vector.load %arg8[%c0_18, %c0_19] : memref<1x2xf32, #tpu.memory_space<vmem>>, vector<1x2xf32>
    tpu.vector_store %arg8[%c0_18, %c0_19], %26 {strides = array<i32>} : memref<1x2xf32, #tpu.memory_space<vmem>>, vector<1x2xf32>,
    return
  }
  func.func @transform_0(%arg0: i32) -> (i32, i32) {
    %c0_i32 = arith.constant 0 : i32
    %c0_i32_0 = arith.constant 0 : i32
    return %arg0, %c0_i32 : i32, i32
  }
  func.func @transform_1(%arg0: i32) -> (i32, i32) {
    %c0_i32 = arith.constant 0 : i32
    %c0_i32_0 = arith.constant 0 : i32
    %c0_i32_1 = arith.constant 0 : i32
    return %c0_i32, %c0_i32_0 : i32, i32
  }
  func.func @transform_2(%arg0: i32) -> (i32, i32) {
    %c0_i32 = arith.constant 0 : i32
    %c0_i32_0 = arith.constant 0 : i32
    %c0_i32_1 = arith.constant 0 : i32
    return %c0_i32, %c0_i32_0 : i32, i32
  }
  func.func @transform_3(%arg0: i32) -> (i32, i32) {
    %c0_i32 = arith.constant 0 : i32
    %c0_i32_0 = arith.constant 0 : i32
    %c0_i32_1 = arith.constant 0 : i32
    return %c0_i32, %c0_i32_0 : i32, i32
  }
  func.func @transform_4(%arg0: i32) -> (i32, i32) {
    %c0_i32 = arith.constant 0 : i32
    %c0_i32_0 = arith.constant 0 : i32
    %c0_i32_1 = arith.constant 0 : i32
    return %c0_i32, %c0_i32_0 : i32, i32
  }
  func.func @transform_5(%arg0: i32) -> (i32, i32) {
    %c0_i32 = arith.constant 0 : i32
    %c0_i32_0 = arith.constant 0 : i32
    %c0_i32_1 = arith.constant 0 : i32
    return %c0_i32, %c0_i32_0 : i32, i32
  }
  func.func @transform_6(%arg0: i32) -> (i32, i32) {
    %c0_i32 = arith.constant 0 : i32
    %c0_i32_0 = arith.constant 0 : i32
    %c0_i32_1 = arith.constant 0 : i32
    return %c0_i32, %c0_i32_0 : i32, i32
  }
  func.func @transform_7(%arg0: i32) -> (i32, i32) {
    %c0_i32 = arith.constant 0 : i32
    %c0_i32_0 = arith.constant 0 : i32
    return %arg0, %c0_i32 : i32, i32
  }
}

</mosaic_0001>

<llo_original>
// kernel: single_layer_classifier.1
$region0: #{single_layer_classifier.1}
  #allocation0 [shape = 'u32[]', space=smem, size = 0x4, offset = 0x4, fixed_abs, tag = 'smem constant byte address 0x4 - core index']
  #allocation1 [shape = 'u32[144,128]{1,0:T(1,128)}', space=vmem, size = 0x12000, scoped, tag = 'internal scratch']
  #allocation2 [shape = 'f32[1,1]{1,0:T(1,128)S(1)}', space=vmem, size = 0x200, scoped, tag = 'scoped memory for single_layer_classifier.1']
  %s0 = inlined_call_operand.vmem [shape: f32[2,32], index: 0, kind: input, shape index: {}]
  %s1 = inlined_call_operand.vmem [shape: f32[32,50], index: 1, kind: input, shape index: {}]
  %s2 = inlined_call_operand.vmem [shape: f32[1,50], index: 2, kind: input, shape index: {}]
  %s3 = inlined_call_operand.vmem [shape: f32[50,20], index: 3, kind: input, shape index: {}]
  %s4 = inlined_call_operand.vmem [shape: f32[1,20], index: 4, kind: input, shape index: {}]
  %s5 = inlined_call_operand.vmem [shape: f32[1,20], index: 5, kind: input, shape index: {}]
  %s6 = inlined_call_operand.<no memory space> [shape: f32[1,1], index: 6, kind: input, shape index: {}]
  %s7 = inlined_call_operand.hbm [shape: f32[1,2], index: 7, kind: output, shape index: {}]
  %s8 = sld [smem:[#allocation0]]
  $region38: #{single_layer_classifier.1} parent=0
    _
  %s10 = ssub.s32 1, %s8
  %s11 = scalar_select 0, %s10, %s8
  %v12 = vstv %s6
  %13 = vst [vmem:[#allocation2] sm:$0x1] %v12
  $region1: #{single_layer_classifier.1} parent=0
    #allocation3 [shape = 'u8[512]{0}', space=vmem, size = 0x400, scoped, tag = 'output window, operand 0, single buffered']
    #allocation4 [shape = 's32[1]{0}', space=sflag, size = 0x4, scoped, tag = 'scoped memory for single_layer_classifier.1']
    %14 = vsyncpa [#allocation4], 0
    // Predicated region
    $region2: #{single_layer_classifier.1} parent=1 // pred_check
      _
    $region3: #{single_layer_classifier.1} parent=1 // pred_check_branch
      %16 = sbr.rel (0) target = $region5
    $region4: #{single_layer_classifier.1} parent=1 // pred_region
      _
    $region5: #{single_layer_classifier.1} parent=1 // pred_fallthru
      _
    // Predicated region
    $region6: #{single_layer_classifier.1} parent=1 // pred_check
      _
    $region7: #{single_layer_classifier.1} parent=1 // pred_check_branch
      %18 = sbr.rel (0) target = $region9
    $region8: #{single_layer_classifier.1} parent=1 // pred_region
      _
    $region9: #{single_layer_classifier.1} parent=1 // pred_fallthru
      _
    // Predicated region
    $region10: #{single_layer_classifier.1} parent=1 // pred_check
      _
    $region11: #{single_layer_classifier.1} parent=1 // pred_check_branch
      %20 = sbr.rel (0) target = $region13
    $region12: #{single_layer_classifier.1} parent=1 // pred_region
      _
    $region13: #{single_layer_classifier.1} parent=1 // pred_fallthru
      _
    // Predicated region
    $region14: #{single_layer_classifier.1} parent=1 // pred_check
      _
    $region15: #{single_layer_classifier.1} parent=1 // pred_check_branch
      %22 = sbr.rel (0) target = $region17
    $region16: #{single_layer_classifier.1} parent=1 // pred_region
      _
    $region17: #{single_layer_classifier.1} parent=1 // pred_fallthru
      _
    // Predicated region
    $region18: #{single_layer_classifier.1} parent=1 // pred_check
      _
    $region19: #{single_layer_classifier.1} parent=1 // pred_check_branch
      %24 = sbr.rel (0) target = $region21
    $region20: #{single_layer_classifier.1} parent=1 // pred_region
      _
    $region21: #{single_layer_classifier.1} parent=1 // pred_fallthru
      _
    // Predicated region
    $region22: #{single_layer_classifier.1} parent=1 // pred_check
      _
    $region23: #{single_layer_classifier.1} parent=1 // pred_check_branch
      %26 = sbr.rel (0) target = $region25
    $region24: #{single_layer_classifier.1} parent=1 // pred_region
      _
    $region25: #{single_layer_classifier.1} parent=1 // pred_fallthru
      _
    // Predicated region
    $region26: #{single_layer_classifier.1} parent=1 // pred_check
      _
    $region27: #{single_layer_classifier.1} parent=1 // pred_check_branch
      %28 = sbr.rel (0) target = $region29
    $region28: #{single_layer_classifier.1} parent=1 // pred_region
      _
    $region29: #{single_layer_classifier.1} parent=1 // pred_fallthru
      _
    %v30 = vld [vmem:[%s0] sm:$0x3]
    %v31 = vpack.c.bf16 %v30, %v30
    %v32 = vld [vmem:[%s1] sm:$0xff]
    %v33 = vld [vmem:[%s1 + $0x8] sm:$0xff]
    %v34 = vld [vmem:[%s1 + $0x10] sm:$0xff]
    %v35 = vld [vmem:[%s1 + $0x18] sm:$0xff]
    %v36 = vpack.c.bf16 %v33, %v32
    %v37 = vpack.c.bf16 %v35, %v34
    %v38 = vld [vmem:[%s2] sm:$0x1]
    %v40 = vlaneseq
    %v41 = vshrl.u32 %v40, 7
    %v42 = vsub.s32 0, %v41
    %v43 = vrot.slane %v38, %v42
    %vm45 = vcmask 261120
    %v47 = vsel %vm45, %v31, 0
    %49 = vmatprep.subr.bf16.mxu0 0
    %50 = vmatpush1.bf16.msra.mxu0 %v36
    %51 = vmatprep.subr.bf16.mxu0 0
    %52 = vmatpush1.bf16.msra.mxu0 %v37
    %53 = vmatprep.subr.bf16.mxu0 0
    %54 = vmatpush1.bf16.msra.mxu0 0
    %55 = vmatprep.subr.bf16.mxu0 0
    %56 = vmatpush1.bf16.msra.mxu0 0
    %57 = vmatprep.subr.bf16.mxu0 0
    %58 = vmatpush1.bf16.msra.mxu0 0
    %59 = vmatprep.subr.bf16.mxu0 0
    %60 = vmatpush1.bf16.msra.mxu0 0
    %61 = vmatprep.subr.bf16.mxu0 0
    %62 = vmatpush1.bf16.msra.mxu0 0
    %63 = vmatprep.subr.bf16.mxu0 0
    %64 = vmatpush1.bf16.msra.mxu0 0
    %65 = vmatprep.subr.bf16.mxu0 0
    %66 = vmatpush1.bf16.msra.mxu0 0
    %67 = vmatprep.subr.bf16.mxu0 0
    %68 = vmatpush1.bf16.msra.mxu0 0
    %69 = vmatprep.subr.bf16.mxu0 0
    %70 = vmatpush1.bf16.msra.mxu0 0
    %71 = vmatprep.subr.bf16.mxu0 0
    %72 = vmatpush1.bf16.msra.mxu0 0
    %73 = vmatprep.subr.bf16.mxu0 0
    %74 = vmatpush1.bf16.msra.mxu0 0
    %75 = vmatprep.subr.bf16.mxu0 0
    %76 = vmatpush1.bf16.msra.mxu0 0
    %77 = vmatprep.subr.bf16.mxu0 0
    %78 = vmatpush1.bf16.msra.mxu0 0
    %79 = vmatprep.subr.bf16.mxu0 0
    %80 = vmatpush1.bf16.msra.mxu0 0
    %81 = vmatprep.mubr.bf16.mxu0 0
    %82 = vmatmul.mubr.bf16.gmra.mrb[0].mxu0 %v47
    %v83 = vpop.f32.mrb[0].mxu0
    %v84 = vadd.f32 %v43, %v83
    %v85 = vpop.f32.mrb[0].mxu0
    %v86 = vpop.f32.mrb[0].mxu0
    %v87 = vpop.f32.mrb[0].mxu0
    %88 = vdwg.mxu0
    %v89 = vmax.f32 %v84, 0.0
    %v90 = vld [vmem:[%s3] sm:$0xff]
    %v91 = vld [vmem:[%s3 + $0x8] sm:$0xff]
    %v92 = vld [vmem:[%s3 + $0x10] sm:$0xff]
    %v93 = vld [vmem:[%s3 + $0x18] sm:$0xff]
    %v94 = vld [vmem:[%s3 + $0x20] sm:$0xff]
    %v95 = vld [vmem:[%s3 + $0x28] sm:$0xff]
    %v96 = vld [vmem:[%s3 + $0x30] sm:$0x3]
    %v97 = vld [vmem:[%s4] sm:$0x1]
    %v99 = vlaneseq
    %v100 = vshrl.u32 %v99, 7
    %v101 = vsub.s32 0, %v100
    %v102 = vrot.slane %v97, %v101
    %vm104 = vcmask 408576
    %v106 = vsel %vm104, %v89, 0
    %vm108 = vcmask 1041408
    %v110 = vsel %vm108, %v96, 0
    %112 = vmatprep.subr.mxu0 0.0
    %113 = vmatpush1.msra.mxu0 %v90
    %114 = vmatprep.subr.mxu0 0.0
    %115 = vmatpush1.msra.mxu0 %v91
    %116 = vmatprep.subr.mxu0 0.0
    %117 = vmatpush1.msra.mxu0 %v92
    %118 = vmatprep.subr.mxu0 0.0
    %119 = vmatpush1.msra.mxu0 %v93
    %120 = vmatprep.subr.mxu0 0.0
    %121 = vmatpush1.msra.mxu0 %v94
    %122 = vmatprep.subr.mxu0 0.0
    %123 = vmatpush1.msra.mxu0 %v95
    %124 = vmatprep.subr.mxu0 0.0
    %125 = vmatpush1.msra.mxu0 %v110
    %126 = vmatprep.subr.mxu0 0.0
    %127 = vmatpush1.msra.mxu0 0.0
    %128 = vmatprep.subr.mxu0 0.0
    %129 = vmatpush1.msra.mxu0 0.0
    %130 = vmatprep.subr.mxu0 0.0
    %131 = vmatpush1.msra.mxu0 0.0
    %132 = vmatprep.subr.mxu0 0.0
    %133 = vmatpush1.msra.mxu0 0.0
    %134 = vmatprep.subr.mxu0 0.0
    %135 = vmatpush1.msra.mxu0 0.0
    %136 = vmatprep.subr.mxu0 0.0
    %137 = vmatpush1.msra.mxu0 0.0
    %138 = vmatprep.subr.mxu0 0.0
    %139 = vmatpush1.msra.mxu0 0.0
    %140 = vmatprep.subr.mxu0 0.0
    %141 = vmatpush1.msra.mxu0 0.0
    %142 = vmatprep.subr.mxu0 0.0
    %143 = vmatpush1.msra.mxu0 0.0
    %144 = vmatprep.subr.mxu0 0.0
    %145 = vmatpush1.msra.mxu0 0.0
    %146 = vmatprep.subr.mxu0 0.0
    %147 = vmatpush1.msra.mxu0 0.0
    %148 = vmatprep.subr.mxu0 0.0
    %149 = vmatpush1.msra.mxu0 0.0
    %150 = vmatprep.subr.mxu0 0.0
    %151 = vmatpush1.msra.mxu0 0.0
    %152 = vmatprep.subr.mxu0 0.0
    %153 = vmatpush1.msra.mxu0 0.0
    %154 = vmatprep.subr.mxu0 0.0
    %155 = vmatpush1.msra.mxu0 0.0
    %156 = vmatprep.subr.mxu0 0.0
    %157 = vmatpush1.msra.mxu0 0.0
    %158 = vmatprep.subr.mxu0 0.0
    %159 = vmatpush1.msra.mxu0 0.0
    %160 = vmatprep.subr.mxu0 0.0
    %161 = vmatpush1.msra.mxu0 0.0
    %162 = vmatprep.subr.mxu0 0.0
    %163 = vmatpush1.msra.mxu0 0.0
    %164 = vmatprep.subr.mxu0 0.0
    %165 = vmatpush1.msra.mxu0 0.0
    %166 = vmatprep.subr.mxu0 0.0
    %167 = vmatpush1.msra.mxu0 0.0
    %168 = vmatprep.subr.mxu0 0.0
    %169 = vmatpush1.msra.mxu0 0.0
    %170 = vmatprep.subr.mxu0 0.0
    %171 = vmatpush1.msra.mxu0 0.0
    %172 = vmatprep.subr.mxu0 0.0
    %173 = vmatpush1.msra.mxu0 0.0
    %174 = vmatprep.subr.mxu0 0.0
    %175 = vmatpush1.msra.mxu0 0.0
    %176 = vmatprep.mubr.f32.mxu0 0.0
    %177 = vmatmul.mubr.f32.gmra.mrb[0].mxu0 %v106
    %v178 = vpop.f32.mrb[0].mxu0
    %v179 = vadd.f32 %v102, %v178
    %v180 = vpop.f32.mrb[0].mxu0
    %181 = vdwg.mxu0
    %v182 = vmax.f32 %v179, 0.0
    %v183 = vld [vmem:[%s5] sm:$0x1]
    %v184 = vld [vmem:[#allocation2] sm:$0x1]
    %186 = vset.pattern.permute.xlu0 0
    %187 = vperm.xlu0 %186, %v184
    %v188 = vpop.permute.xlu0 %187
    %v190 = vlaneseq
    %v191 = vshrl.u32 %v190, 7
    %v192 = vsub.s32 0, %v191
    %v193 = vrot.slane %v188, %v192
    %vm194 = vcmask 162816
    %v196 = vsel %vm194, %v183, 0
    %v199 = vsel %vm194, %v182, 0
    %201 = vmatprep.subr.mxu0 0.0
    %202 = vmatpush1.xpose.msra.mxu0 %v199
    %203 = vmatprep.subr.mxu0 0.0
    %204 = vmatpush1.xpose.msra.mxu0 0.0
    %205 = vmatprep.subr.mxu0 0.0
    %206 = vmatpush1.xpose.msra.mxu0 0.0
    %207 = vmatprep.subr.mxu0 0.0
    %208 = vmatpush1.xpose.msra.mxu0 0.0
    %209 = vmatprep.subr.mxu0 0.0
    %210 = vmatpush1.xpose.msra.mxu0 0.0
    %211 = vmatprep.subr.mxu0 0.0
    %212 = vmatpush1.xpose.msra.mxu0 0.0
    %213 = vmatprep.subr.mxu0 0.0
    %214 = vmatpush1.xpose.msra.mxu0 0.0
    %215 = vmatprep.subr.mxu0 0.0
    %216 = vmatpush1.xpose.msra.mxu0 0.0
    %217 = vmatprep.subr.mxu0 0.0
    %218 = vmatpush1.xpose.msra.mxu0 0.0
    %219 = vmatprep.subr.mxu0 0.0
    %220 = vmatpush1.xpose.msra.mxu0 0.0
    %221 = vmatprep.subr.mxu0 0.0
    %222 = vmatpush1.xpose.msra.mxu0 0.0
    %223 = vmatprep.subr.mxu0 0.0
    %224 = vmatpush1.xpose.msra.mxu0 0.0
    %225 = vmatprep.subr.mxu0 0.0
    %226 = vmatpush1.xpose.msra.mxu0 0.0
    %227 = vmatprep.subr.mxu0 0.0
    %228 = vmatpush1.xpose.msra.mxu0 0.0
    %229 = vmatprep.subr.mxu0 0.0
    %230 = vmatpush1.xpose.msra.mxu0 0.0
    %231 = vmatprep.subr.mxu0 0.0
    %232 = vmatpush1.xpose.msra.mxu0 0.0
    %233 = vmatprep.subr.mxu0 0.0
    %234 = vmatpush1.xpose.msra.mxu0 0.0
    %235 = vmatprep.subr.mxu0 0.0
    %236 = vmatpush1.xpose.msra.mxu0 0.0
    %237 = vmatprep.subr.mxu0 0.0
    %238 = vmatpush1.xpose.msra.mxu0 0.0
    %239 = vmatprep.subr.mxu0 0.0
    %240 = vmatpush1.xpose.msra.mxu0 0.0
    %241 = vmatprep.subr.mxu0 0.0
    %242 = vmatpush1.xpose.msra.mxu0 0.0
    %243 = vmatprep.subr.mxu0 0.0
    %244 = vmatpush1.xpose.msra.mxu0 0.0
    %245 = vmatprep.subr.mxu0 0.0
    %246 = vmatpush1.xpose.msra.mxu0 0.0
    %247 = vmatprep.subr.mxu0 0.0
    %248 = vmatpush1.xpose.msra.mxu0 0.0
    %249 = vmatprep.subr.mxu0 0.0
    %250 = vmatpush1.xpose.msra.mxu0 0.0
    %251 = vmatprep.subr.mxu0 0.0
    %252 = vmatpush1.xpose.msra.mxu0 0.0
    %253 = vmatprep.subr.mxu0 0.0
    %254 = vmatpush1.xpose.msra.mxu0 0.0
    %255 = vmatprep.subr.mxu0 0.0
    %256 = vmatpush1.xpose.msra.mxu0 0.0
    %257 = vmatprep.subr.mxu0 0.0
    %258 = vmatpush1.xpose.msra.mxu0 0.0
    %259 = vmatprep.subr.mxu0 0.0
    %260 = vmatpush1.xpose.msra.mxu0 0.0
    %261 = vmatprep.subr.mxu0 0.0
    %262 = vmatpush1.xpose.msra.mxu0 0.0
    %263 = vmatprep.subr.mxu0 0.0
    %264 = vmatpush1.xpose.msra.mxu0 0.0
    %265 = vmatprep.mubr.f32.mxu0 0.0
    %266 = vmatmul.mubr.f32.gmra.mrb[0].mxu0 %v196
    %v267 = vpop.f32.mrb[0].mxu0
    %v268 = vadd.f32 %v193, %v267
    %v269 = vpop.f32.mrb[0].mxu0
    %270 = vdwg.mxu0
    %v271 = vxor.u32 %v268, 2147483648
    %v272 = vmul.f32 %v271, 1.442695
    %v273 = vpow.pop %v272
    %v274 = vadd.f32 %v273, 1.0
    %v275 = vrcp.pop %v274
    %v276 = vmul.f32 1.0, %v275
    %vm277 = vcmask 8192
    %278 = vst.msk [vmem:[#allocation3] sm:$0x1] %vm277, %v276
    // Predicated region
    $region30: #{single_layer_classifier.1} parent=1 // pred_check
      _
    $region31: #{single_layer_classifier.1} parent=1 // pred_check_branch
      %280 = sbr.rel (0) target = $region33
    $region32: #{single_layer_classifier.1} parent=1 // pred_region
      %s282 = ssub.s32 16, 16
      %283 = vsyncadd [#allocation4], %s282
      %s285 = sshll.u32 [#allocation3], 4
      %s286 = int_to_ptr.vmem [resolvable:$true] %s285
      %288 = dma.vmem_to_hbm [thread:$0]  %s286, 16, %s7, [#allocation4]
    $region33: #{single_layer_classifier.1} parent=1 // pred_fallthru
      _
    // Predicated region
    $region34: #{single_layer_classifier.1} parent=1 // pred_check
      _
    $region35: #{single_layer_classifier.1} parent=1 // pred_check_branch
      %290 = sbr.rel (0) target = $region37
    $region36: #{single_layer_classifier.1} parent=1 // pred_region
      %291 = dma.done [#allocation4], 16
    $region37: #{single_layer_classifier.1} parent=1 // pred_fallthru
      _
    %292 = vsyncpa [#allocation4], 1

</llo_original>
